<compile_context>
chip_gen: v6e
topology: v6e:2x2x1
jax: 0.10.0
libtpu: 0.0.40
codegen_flags: <defaults>
</compile_context>

<pallas_src>
import functools

import jax
import jax.numpy as jnp
import numpy as np
from jax import lax
from jax.experimental import pallas as pl
from jax.experimental.pallas import tpu as pltpu


def _lstmdqn_kernel(wstep_ref, xproj_ref, whh_ref, wl_ref, bl_ref, wheads_ref,
                    out_ref, *, hidden):
    T = xproj_ref.shape[0]
    B = out_ref.shape[0]          # padded batch (multiple of 8)
    H = hidden

    whh_bf = whh_ref[...]         # (H, 4H) bfloat16 recurrent weights

    h0 = jnp.zeros((B, H), jnp.float32)
    c0 = jnp.zeros((B, H), jnp.float32)
    s0 = jnp.zeros((B, H), jnp.float32)

    def step(t, carry):
        h, c, s = carry
        # x_proj already contains  x_t @ W_ih.T + (b_ih + b_hh).
        # bf16 operands -> single MXU pass; f32 accumulation.
        gates = xproj_ref[t] + jnp.dot(h.astype(jnp.bfloat16), whh_bf,
                                       preferred_element_type=jnp.float32)
        # One full-width EUP sigmoid pass covers i / f / o; tanh on the g slice.
        sig = jax.nn.sigmoid(gates)                 # (B, 4H)
        i_g = sig[:, 0 * H:1 * H]
        f_g = sig[:, 1 * H:2 * H]
        o_g = sig[:, 3 * H:4 * H]
        g_g = jnp.tanh(gates[:, 2 * H:3 * H])
        c_new = f_g * c + i_g * g_g
        h_new = o_g * jnp.tanh(c_new)
        # wstep folds the packed-sequence mask and the 1/count mean weight.
        s_new = s + wstep_ref[t] * h_new
        return h_new, c_new, s_new

    _, _, s = lax.fori_loop(0, T, step, (h0, c0, s0), unroll=True)

    v = jnp.maximum(s, 0.0)                                         # ReLU(mean)
    v = jnp.dot(v, wl_ref[...], preferred_element_type=jnp.float32) + bl_ref[...]
    v = jnp.maximum(v, 0.0)                                         # ReLU
    # Fused, lane-dense heads: (B_pad, H) @ (H, 128) -> full-tile unmasked store.
    out_ref[...] = jnp.dot(v, wheads_ref[...],
                           preferred_element_type=jnp.float32)


def lstmdqn_forward(params, inputs, seq_lengths):
    """inputs: (B, T) int32 token ids; seq_lengths: (B,) int32 (sorted desc)."""
    emb = params["embedding"].astype(jnp.float32)          # (V, E)
    w_ih = params["w_ih"].astype(jnp.float32)               # (4H, E)
    w_hh = params["w_hh"].astype(jnp.float32)               # (4H, H)
    bias = (params["b_ih"] + params["b_hh"]).astype(jnp.float32)  # (4H,)
    w_lin = params["w_lin"].astype(jnp.float32)              # (H, H)
    b_lin = params["b_lin"].astype(jnp.float32)              # (H,)
    w_act = params["w_act"].astype(jnp.float32)              # (A, H)
    w_obj = params["w_obj"].astype(jnp.float32)              # (O, H)

    B, T = inputs.shape
    H = w_hh.shape[1]
    A = w_act.shape[0]
    O = w_obj.shape[0]
    B_pad = max(8, ((B + 7) // 8) * 8)       # f32 sublane granularity
    OUT_LANES = 128                           # lane-dense output tile width

    # Fold the linear input projection + biases into the embedding table, then
    # gather per token directly in (T, B_pad, 4H) order (no float transpose).
    proj_table = jnp.dot(emb, w_ih.T,
                         precision=jax.lax.Precision.HIGHEST) + bias   # (V, 4H)
    inputs_p = jnp.zeros((B_pad, T), jnp.int32).at[:B].set(inputs.astype(jnp.int32))
    x_proj = jnp.take(proj_table, inputs_p.T, axis=0)                  # (T, B_pad, 4H)

    # Per-step weight: (t < min(len,30)) / min(len,30); zero for padded rows.
    counts = jnp.clip(seq_lengths.astype(jnp.int32), 1, 30)            # (B,)
    counts_p = jnp.zeros((B_pad,), jnp.int32).at[:B].set(counts)       # pad rows -> 0
    t_idx = jnp.arange(T, dtype=jnp.int32)[:, None]                    # (T, 1)
    inv = 1.0 / jnp.maximum(counts_p, 1).astype(jnp.float32)           # (B_pad,)
    wstep = jnp.where(t_idx < counts_p[None, :], inv[None, :], 0.0)    # (T, B_pad)
    wstep = wstep.reshape(T, B_pad, 1).astype(jnp.float32)

    whh_t = w_hh.T.astype(jnp.bfloat16)                                # (H, 4H) MXU operand
    wheads_t = jnp.zeros((H, OUT_LANES), jnp.float32)
    wheads_t = wheads_t.at[:, :A].set(w_act.T).at[:, A:A + O].set(w_obj.T)

    kernel_in = (wstep, x_proj, whh_t, w_lin.T, b_lin.reshape(1, H), wheads_t)

    flops = (2 * T * B_pad * H * 4 * H          # recurrence matmuls
             + 2 * B_pad * H * H                # hidden linear
             + 2 * B_pad * H * OUT_LANES        # fused heads
             + 10 * T * B_pad * 4 * H)          # gate elementwise (approx)
    transcendentals = T * B_pad * (4 * H + 2 * H)
    bytes_accessed = (wstep.size + x_proj.size + w_lin.size + b_lin.size
                      + wheads_t.size + B_pad * OUT_LANES) * 4 + whh_t.size * 2

    heads = pl.pallas_call(
        functools.partial(_lstmdqn_kernel, hidden=H),
        out_shape=jax.ShapeDtypeStruct((B_pad, OUT_LANES), jnp.float32),
        in_specs=[pl.BlockSpec(memory_space=pltpu.MemorySpace.VMEM)] * len(kernel_in),
        out_specs=pl.BlockSpec(memory_space=pltpu.MemorySpace.VMEM),
        cost_estimate=pl.CostEstimate(flops=int(flops),
                                      transcendentals=int(transcendentals),
                                      bytes_accessed=int(bytes_accessed)),
    )(*kernel_in)

    return heads[:B, :A], heads[:B, A:A + O]


def reference_forward(params, inputs, seq_lengths):
    """Pure NumPy reference mirroring the PyTorch forward semantics."""
    emb = np.asarray(params["embedding"])
    w_ih = np.asarray(params["w_ih"]); w_hh = np.asarray(params["w_hh"])
    b = np.asarray(params["b_ih"]) + np.asarray(params["b_hh"])
    H = w_hh.shape[1]
    B, T = inputs.shape

    def sigmoid(x):
        return 1.0 / (1.0 + np.exp(-x))

    embeds = emb[inputs]                                 # (B, T, E)
    h = np.zeros((B, H), np.float32)
    c = np.zeros((B, H), np.float32)
    outs = np.zeros((T, B, H), np.float32)
    for t in range(T):
        g = embeds[:, t, :] @ w_ih.T + h @ w_hh.T + b
        i = sigmoid(g[:, :H]); f = sigmoid(g[:, H:2 * H])
        gg = np.tanh(g[:, 2 * H:3 * H]); o = sigmoid(g[:, 3 * H:])
        c = f * c + i * gg
        h = o * np.tanh(c)
        outs[t] = h

    out_vals = np.zeros((B, H), np.float32)
    for i_b, val in enumerate(np.asarray(seq_lengths)):
        out_vals[i_b] = outs[:min(int(val), 30), i_b].mean(axis=0)
    v = np.maximum(out_vals, 0.0)
    v = v @ np.asarray(params["w_lin"]).T + np.asarray(params["b_lin"])
    v = np.maximum(v, 0.0)
    return v @ np.asarray(params["w_act"]).T, v @ np.asarray(params["w_obj"]).T


if __name__ == "__main__":
    # Small shapes implied by the module: vocab=50, embed=32, hidden=32,
    # actions=8, objects=6, batch=4, max seq len=8.
    V, E, H, A, O = 50, 32, 32, 8, 6
    B, T = 4, 8

    key = jax.random.PRNGKey(0)
    keys = jax.random.split(key, 10)
    params = {
        "embedding": jax.random.normal(keys[0], (V, E), jnp.float32) * 0.1,
        "w_ih":      jax.random.normal(keys[1], (4 * H, E), jnp.float32) * 0.1,
        "w_hh":      jax.random.normal(keys[2], (4 * H, H), jnp.float32) * 0.1,
        "b_ih":      jax.random.normal(keys[3], (4 * H,), jnp.float32) * 0.1,
        "b_hh":      jax.random.normal(keys[4], (4 * H,), jnp.float32) * 0.1,
        "w_lin":     jax.random.normal(keys[5], (H, H), jnp.float32) * 0.1,
        "b_lin":     jax.random.normal(keys[6], (H,), jnp.float32) * 0.1,
        "w_act":     jax.random.normal(keys[7], (A, H), jnp.float32) * 0.1,
        "w_obj":     jax.random.normal(keys[8], (O, H), jnp.float32) * 0.1,
    }

    inputs = jax.random.randint(keys[9], (B, T), 0, V, dtype=jnp.int32)
    # pack_padded_sequence requires lengths sorted in descending order.
    seq_lengths = jnp.array([8, 6, 5, 3], dtype=jnp.int32)

    fwd = jax.jit(functools.partial(lstmdqn_forward, params))
    out_action, out_object = fwd(inputs, seq_lengths)
    jax.block_until_ready((out_action, out_object))

    ref_action, ref_object = reference_forward(params, np.asarray(inputs),
                                               np.asarray(seq_lengths))
    # Tolerance accounts for the bf16 MXU operands in the recurrence (error
    # estimate well below 1e-3 at these weight scales).
    assert np.allclose(np.asarray(out_action), ref_action, rtol=1e-2, atol=2e-3)
    assert np.allclose(np.asarray(out_object), ref_object, rtol=1e-2, atol=2e-3)
    print("KERNEL_OK")
</pallas_src>

<mosaic_0001>
module attributes {stable_mosaic.version = 11 : i64} {
  func.func @_lstmdqn_kernel(%arg0: memref<8x8x1xf32, #tpu.memory_space<vmem>>, %arg1: memref<8x8x128xf32, #tpu.memory_space<vmem>>, %arg2: memref<32x128xbf16, #tpu.memory_space<vmem>>, %arg3: memref<32x32xf32, #tpu.memory_space<vmem>>, %arg4: memref<1x32xf32, #tpu.memory_space<vmem>>, %arg5: memref<32x128xf32, #tpu.memory_space<vmem>>, %arg6: memref<8x128xf32, #tpu.memory_space<vmem>>) attributes {dimension_semantics = [], scalar_prefetch = 0 : i64, scratch_operands = 0 : i64, tpu.core_type = #tpu.core_type<tc>} {
    %c0 = arith.constant 0 : index
    %c0_0 = arith.constant 0 : index
    %0 = vector.load %arg2[%c0, %c0_0] : memref<32x128xbf16, #tpu.memory_space<vmem>>, vector<32x128xbf16>
    %cst = arith.constant 0.000000e+00 : f32
    %1 = vector.broadcast %cst : f32 to vector<8x32xf32>
    %cst_1 = arith.constant 0.000000e+00 : f32
    %2 = vector.broadcast %cst_1 : f32 to vector<8x32xf32>
    %cst_2 = arith.constant 0.000000e+00 : f32
    %3 = vector.broadcast %cst_2 : f32 to vector<8x32xf32>
    %c0_i32 = arith.constant 0 : i32
    %4 = arith.index_cast %c0_i32 : i32 to index
    %c0_3 = arith.constant 0 : index
    %c0_4 = arith.constant 0 : index
    %5 = vector.load %arg1[%4, %c0_3, %c0_4] : memref<8x8x128xf32, #tpu.memory_space<vmem>>, vector<1x8x128xf32>
    %6 = vector.shape_cast %5 : vector<1x8x128xf32> to vector<8x128xf32>
    %7 = arith.truncf %1 : vector<8x32xf32> to vector<8x32xbf16>
    %cst_5 = arith.constant dense<0.000000e+00> : vector<8x128xf32>
    %8 = tpu.matmul %7, %0, %cst_5 {dimension_numbers = #tpu.dot_dimension_numbers<[1], [0], [0], [1], [0, 0, 1, 1], [], []>} : vector<8x32xbf16>, vector<32x128xbf16>, vector<8x128xf32> -> vector<8x128xf32>
    %9 = arith.addf %6, %8 : vector<8x128xf32>
    %10 = arith.negf %9 : vector<8x128xf32>
    %11 = math.exp %10 : vector<8x128xf32>
    %cst_6 = arith.constant 1.000000e+00 : f32
    %12 = vector.broadcast %cst_6 : f32 to vector<8x128xf32>
    %13 = arith.addf %12, %11 : vector<8x128xf32>
    %14 = arith.divf %12, %13 : vector<8x128xf32>
    %15 = vector.extract_strided_slice %14 {offsets = [0, 0], sizes = [8, 32], strides = [1, 1]} : vector<8x128xf32> to vector<8x32xf32>
    %16 = vector.extract_strided_slice %14 {offsets = [0, 32], sizes = [8, 32], strides = [1, 1]} : vector<8x128xf32> to vector<8x32xf32>
    %17 = vector.extract_strided_slice %14 {offsets = [0, 96], sizes = [8, 32], strides = [1, 1]} : vector<8x128xf32> to vector<8x32xf32>
    %18 = vector.extract_strided_slice %9 {offsets = [0, 64], sizes = [8, 32], strides = [1, 1]} : vector<8x128xf32> to vector<8x32xf32>
    %19 = math.tanh %18 : vector<8x32xf32>
    %20 = arith.mulf %16, %2 : vector<8x32xf32>
    %21 = arith.mulf %15, %19 : vector<8x32xf32>
    %22 = arith.addf %20, %21 : vector<8x32xf32>
    %23 = math.tanh %22 : vector<8x32xf32>
    %24 = arith.mulf %17, %23 : vector<8x32xf32>
    %25 = arith.index_cast %c0_i32 : i32 to index
    %c0_7 = arith.constant 0 : index
    %c0_8 = arith.constant 0 : index
    %26 = vector.load %arg0[%25, %c0_7, %c0_8] : memref<8x8x1xf32, #tpu.memory_space<vmem>>, vector<1x8x1xf32>
    %27 = vector.shape_cast %26 : vector<1x8x1xf32> to vector<8x1xf32>
    %28 = vector.broadcast %27 : vector<8x1xf32> to vector<8x32xf32>
    %29 = arith.mulf %28, %24 : vector<8x32xf32>
    %30 = arith.addf %3, %29 : vector<8x32xf32>
    %c1_i32 = arith.constant 1 : i32
    %31 = arith.index_cast %c1_i32 : i32 to index
    %c0_9 = arith.constant 0 : index
    %c0_10 = arith.constant 0 : index
    %32 = vector.load %arg1[%31, %c0_9, %c0_10] : memref<8x8x128xf32, #tpu.memory_space<vmem>>, vector<1x8x128xf32>
    %33 = vector.shape_cast %32 : vector<1x8x128xf32> to vector<8x128xf32>
    %34 = arith.truncf %24 : vector<8x32xf32> to vector<8x32xbf16>
    %cst_11 = arith.constant dense<0.000000e+00> : vector<8x128xf32>
    %35 = tpu.matmul %34, %0, %cst_11 {dimension_numbers = #tpu.dot_dimension_numbers<[1], [0], [0], [1], [0, 0, 1, 1], [], []>} : vector<8x32xbf16>, vector<32x128xbf16>, vector<8x128xf32> -> vector<8x128xf32>
    %36 = arith.addf %33, %35 : vector<8x128xf32>
    %37 = arith.negf %36 : vector<8x128xf32>
    %38 = math.exp %37 : vector<8x128xf32>
    %cst_12 = arith.constant 1.000000e+00 : f32
    %39 = vector.broadcast %cst_12 : f32 to vector<8x128xf32>
    %40 = arith.addf %39, %38 : vector<8x128xf32>
    %41 = arith.divf %39, %40 : vector<8x128xf32>
    %42 = vector.extract_strided_slice %41 {offsets = [0, 0], sizes = [8, 32], strides = [1, 1]} : vector<8x128xf32> to vector<8x32xf32>
    %43 = vector.extract_strided_slice %41 {offsets = [0, 32], sizes = [8, 32], strides = [1, 1]} : vector<8x128xf32> to vector<8x32xf32>
    %44 = vector.extract_strided_slice %41 {offsets = [0, 96], sizes = [8, 32], strides = [1, 1]} : vector<8x128xf32> to vector<8x32xf32>
    %45 = vector.extract_strided_slice %36 {offsets = [0, 64], sizes = [8, 32], strides = [1, 1]} : vector<8x128xf32> to vector<8x32xf32>
    %46 = math.tanh %45 : vector<8x32xf32>
    %47 = arith.mulf %43, %22 : vector<8x32xf32>
    %48 = arith.mulf %42, %46 : vector<8x32xf32>
    %49 = arith.addf %47, %48 : vector<8x32xf32>
    %50 = math.tanh %49 : vector<8x32xf32>
    %51 = arith.mulf %44, %50 : vector<8x32xf32>
    %52 = arith.index_cast %c1_i32 : i32 to index
    %c0_13 = arith.constant 0 : index
    %c0_14 = arith.constant 0 : index
    %53 = vector.load %arg0[%52, %c0_13, %c0_14] : memref<8x8x1xf32, #tpu.memory_space<vmem>>, vector<1x8x1xf32>
    %54 = vector.shape_cast %53 : vector<1x8x1xf32> to vector<8x1xf32>
    %55 = vector.broadcast %54 : vector<8x1xf32> to vector<8x32xf32>
    %56 = arith.mulf %55, %51 : vector<8x32xf32>
    %57 = arith.addf %30, %56 : vector<8x32xf32>
    %c2_i32 = arith.constant 2 : i32
    %58 = arith.index_cast %c2_i32 : i32 to index
    %c0_15 = arith.constant 0 : index
    %c0_16 = arith.constant 0 : index
    %59 = vector.load %arg1[%58, %c0_15, %c0_16] : memref<8x8x128xf32, #tpu.memory_space<vmem>>, vector<1x8x128xf32>
    %60 = vector.shape_cast %59 : vector<1x8x128xf32> to vector<8x128xf32>
    %61 = arith.truncf %51 : vector<8x32xf32> to vector<8x32xbf16>
    %cst_17 = arith.constant dense<0.000000e+00> : vector<8x128xf32>
    %62 = tpu.matmul %61, %0, %cst_17 {dimension_numbers = #tpu.dot_dimension_numbers<[1], [0], [0], [1], [0, 0, 1, 1], [], []>} : vector<8x32xbf16>, vector<32x128xbf16>, vector<8x128xf32> -> vector<8x128xf32>
    %63 = arith.addf %60, %62 : vector<8x128xf32>
    %64 = arith.negf %63 : vector<8x128xf32>
    %65 = math.exp %64 : vector<8x128xf32>
    %cst_18 = arith.constant 1.000000e+00 : f32
    %66 = vector.broadcast %cst_18 : f32 to vector<8x128xf32>
    %67 = arith.addf %66, %65 : vector<8x128xf32>
    %68 = arith.divf %66, %67 : vector<8x128xf32>
    %69 = vector.extract_strided_slice %68 {offsets = [0, 0], sizes = [8, 32], strides = [1, 1]} : vector<8x128xf32> to vector<8x32xf32>
    %70 = vector.extract_strided_slice %68 {offsets = [0, 32], sizes = [8, 32], strides = [1, 1]} : vector<8x128xf32> to vector<8x32xf32>
    %71 = vector.extract_strided_slice %68 {offsets = [0, 96], sizes = [8, 32], strides = [1, 1]} : vector<8x128xf32> to vector<8x32xf32>
    %72 = vector.extract_strided_slice %63 {offsets = [0, 64], sizes = [8, 32], strides = [1, 1]} : vector<8x128xf32> to vector<8x32xf32>
    %73 = math.tanh %72 : vector<8x32xf32>
    %74 = arith.mulf %70, %49 : vector<8x32xf32>
    %75 = arith.mulf %69, %73 : vector<8x32xf32>
    %76 = arith.addf %74, %75 : vector<8x32xf32>
    %77 = math.tanh %76 : vector<8x32xf32>
    %78 = arith.mulf %71, %77 : vector<8x32xf32>
    %79 = arith.index_cast %c2_i32 : i32 to index
    %c0_19 = arith.constant 0 : index
    %c0_20 = arith.constant 0 : index
    %80 = vector.load %arg0[%79, %c0_19, %c0_20] : memref<8x8x1xf32, #tpu.memory_space<vmem>>, vector<1x8x1xf32>
    %81 = vector.shape_cast %80 : vector<1x8x1xf32> to vector<8x1xf32>
    %82 = vector.broadcast %81 : vector<8x1xf32> to vector<8x32xf32>
    %83 = arith.mulf %82, %78 : vector<8x32xf32>
    %84 = arith.addf %57, %83 : vector<8x32xf32>
    %c3_i32 = arith.constant 3 : i32
    %85 = arith.index_cast %c3_i32 : i32 to index
    %c0_21 = arith.constant 0 : index
    %c0_22 = arith.constant 0 : index
    %86 = vector.load %arg1[%85, %c0_21, %c0_22] : memref<8x8x128xf32, #tpu.memory_space<vmem>>, vector<1x8x128xf32>
    %87 = vector.shape_cast %86 : vector<1x8x128xf32> to vector<8x128xf32>
    %88 = arith.truncf %78 : vector<8x32xf32> to vector<8x32xbf16>
    %cst_23 = arith.constant dense<0.000000e+00> : vector<8x128xf32>
    %89 = tpu.matmul %88, %0, %cst_23 {dimension_numbers = #tpu.dot_dimension_numbers<[1], [0], [0], [1], [0, 0, 1, 1], [], []>} : vector<8x32xbf16>, vector<32x128xbf16>, vector<8x128xf32> -> vector<8x128xf32>
    %90 = arith.addf %87, %89 : vector<8x128xf32>
    %91 = arith.negf %90 : vector<8x128xf32>
    %92 = math.exp %91 : vector<8x128xf32>
    %cst_24 = arith.constant 1.000000e+00 : f32
    %93 = vector.broadcast %cst_24 : f32 to vector<8x128xf32>
    %94 = arith.addf %93, %92 : vector<8x128xf32>
    %95 = arith.divf %93, %94 : vector<8x128xf32>
    %96 = vector.extract_strided_slice %95 {offsets = [0, 0], sizes = [8, 32], strides = [1, 1]} : vector<8x128xf32> to vector<8x32xf32>
    %97 = vector.extract_strided_slice %95 {offsets = [0, 32], sizes = [8, 32], strides = [1, 1]} : vector<8x128xf32> to vector<8x32xf32>
    %98 = vector.extract_strided_slice %95 {offsets = [0, 96], sizes = [8, 32], strides = [1, 1]} : vector<8x128xf32> to vector<8x32xf32>
    %99 = vector.extract_strided_slice %90 {offsets = [0, 64], sizes = [8, 32], strides = [1, 1]} : vector<8x128xf32> to vector<8x32xf32>
    %100 = math.tanh %99 : vector<8x32xf32>
    %101 = arith.mulf %97, %76 : vector<8x32xf32>
    %102 = arith.mulf %96, %100 : vector<8x32xf32>
    %103 = arith.addf %101, %102 : vector<8x32xf32>
    %104 = math.tanh %103 : vector<8x32xf32>
    %105 = arith.mulf %98, %104 : vector<8x32xf32>
    %106 = arith.index_cast %c3_i32 : i32 to index
    %c0_25 = arith.constant 0 : index
    %c0_26 = arith.constant 0 : index
    %107 = vector.load %arg0[%106, %c0_25, %c0_26] : memref<8x8x1xf32, #tpu.memory_space<vmem>>, vector<1x8x1xf32>
    %108 = vector.shape_cast %107 : vector<1x8x1xf32> to vector<8x1xf32>
    %109 = vector.broadcast %108 : vector<8x1xf32> to vector<8x32xf32>
    %110 = arith.mulf %109, %105 : vector<8x32xf32>
    %111 = arith.addf %84, %110 : vector<8x32xf32>
    %c4_i32 = arith.constant 4 : i32
    %112 = arith.index_cast %c4_i32 : i32 to index
    %c0_27 = arith.constant 0 : index
    %c0_28 = arith.constant 0 : index
    %113 = vector.load %arg1[%112, %c0_27, %c0_28] : memref<8x8x128xf32, #tpu.memory_space<vmem>>, vector<1x8x128xf32>
    %114 = vector.shape_cast %113 : vector<1x8x128xf32> to vector<8x128xf32>
    %115 = arith.truncf %105 : vector<8x32xf32> to vector<8x32xbf16>
    %cst_29 = arith.constant dense<0.000000e+00> : vector<8x128xf32>
    %116 = tpu.matmul %115, %0, %cst_29 {dimension_numbers = #tpu.dot_dimension_numbers<[1], [0], [0], [1], [0, 0, 1, 1], [], []>} : vector<8x32xbf16>, vector<32x128xbf16>, vector<8x128xf32> -> vector<8x128xf32>
    %117 = arith.addf %114, %116 : vector<8x128xf32>
    %118 = arith.negf %117 : vector<8x128xf32>
    %119 = math.exp %118 : vector<8x128xf32>
    %cst_30 = arith.constant 1.000000e+00 : f32
    %120 = vector.broadcast %cst_30 : f32 to vector<8x128xf32>
    %121 = arith.addf %120, %119 : vector<8x128xf32>
    %122 = arith.divf %120, %121 : vector<8x128xf32>
    %123 = vector.extract_strided_slice %122 {offsets = [0, 0], sizes = [8, 32], strides = [1, 1]} : vector<8x128xf32> to vector<8x32xf32>
    %124 = vector.extract_strided_slice %122 {offsets = [0, 32], sizes = [8, 32], strides = [1, 1]} : vector<8x128xf32> to vector<8x32xf32>
    %125 = vector.extract_strided_slice %122 {offsets = [0, 96], sizes = [8, 32], strides = [1, 1]} : vector<8x128xf32> to vector<8x32xf32>
    %126 = vector.extract_strided_slice %117 {offsets = [0, 64], sizes = [8, 32], strides = [1, 1]} : vector<8x128xf32> to vector<8x32xf32>
    %127 = math.tanh %126 : vector<8x32xf32>
    %128 = arith.mulf %124, %103 : vector<8x32xf32>
    %129 = arith.mulf %123, %127 : vector<8x32xf32>
    %130 = arith.addf %128, %129 : vector<8x32xf32>
    %131 = math.tanh %130 : vector<8x32xf32>
    %132 = arith.mulf %125, %131 : vector<8x32xf32>
    %133 = arith.index_cast %c4_i32 : i32 to index
    %c0_31 = arith.constant 0 : index
    %c0_32 = arith.constant 0 : index
    %134 = vector.load %arg0[%133, %c0_31, %c0_32] : memref<8x8x1xf32, #tpu.memory_space<vmem>>, vector<1x8x1xf32>
    %135 = vector.shape_cast %134 : vector<1x8x1xf32> to vector<8x1xf32>
    %136 = vector.broadcast %135 : vector<8x1xf32> to vector<8x32xf32>
    %137 = arith.mulf %136, %132 : vector<8x32xf32>
    %138 = arith.addf %111, %137 : vector<8x32xf32>
    %c5_i32 = arith.constant 5 : i32
    %139 = arith.index_cast %c5_i32 : i32 to index
    %c0_33 = arith.constant 0 : index
    %c0_34 = arith.constant 0 : index
    %140 = vector.load %arg1[%139, %c0_33, %c0_34] : memref<8x8x128xf32, #tpu.memory_space<vmem>>, vector<1x8x128xf32>
    %141 = vector.shape_cast %140 : vector<1x8x128xf32> to vector<8x128xf32>
    %142 = arith.truncf %132 : vector<8x32xf32> to vector<8x32xbf16>
    %cst_35 = arith.constant dense<0.000000e+00> : vector<8x128xf32>
    %143 = tpu.matmul %142, %0, %cst_35 {dimension_numbers = #tpu.dot_dimension_numbers<[1], [0], [0], [1], [0, 0, 1, 1], [], []>} : vector<8x32xbf16>, vector<32x128xbf16>, vector<8x128xf32> -> vector<8x128xf32>
    %144 = arith.addf %141, %143 : vector<8x128xf32>
    %145 = arith.negf %144 : vector<8x128xf32>
    %146 = math.exp %145 : vector<8x128xf32>
    %cst_36 = arith.constant 1.000000e+00 : f32
    %147 = vector.broadcast %cst_36 : f32 to vector<8x128xf32>
    %148 = arith.addf %147, %146 : vector<8x128xf32>
    %149 = arith.divf %147, %148 : vector<8x128xf32>
    %150 = vector.extract_strided_slice %149 {offsets = [0, 0], sizes = [8, 32], strides = [1, 1]} : vector<8x128xf32> to vector<8x32xf32>
    %151 = vector.extract_strided_slice %149 {offsets = [0, 32], sizes = [8, 32], strides = [1, 1]} : vector<8x128xf32> to vector<8x32xf32>
    %152 = vector.extract_strided_slice %149 {offsets = [0, 96], sizes = [8, 32], strides = [1, 1]} : vector<8x128xf32> to vector<8x32xf32>
    %153 = vector.extract_strided_slice %144 {offsets = [0, 64], sizes = [8, 32], strides = [1, 1]} : vector<8x128xf32> to vector<8x32xf32>
    %154 = math.tanh %153 : vector<8x32xf32>
    %155 = arith.mulf %151, %130 : vector<8x32xf32>
    %156 = arith.mulf %150, %154 : vector<8x32xf32>
    %157 = arith.addf %155, %156 : vector<8x32xf32>
    %158 = math.tanh %157 : vector<8x32xf32>
    %159 = arith.mulf %152, %158 : vector<8x32xf32>
    %160 = arith.index_cast %c5_i32 : i32 to index
    %c0_37 = arith.constant 0 : index
    %c0_38 = arith.constant 0 : index
    %161 = vector.load %arg0[%160, %c0_37, %c0_38] : memref<8x8x1xf32, #tpu.memory_space<vmem>>, vector<1x8x1xf32>
    %162 = vector.shape_cast %161 : vector<1x8x1xf32> to vector<8x1xf32>
    %163 = vector.broadcast %162 : vector<8x1xf32> to vector<8x32xf32>
    %164 = arith.mulf %163, %159 : vector<8x32xf32>
    %165 = arith.addf %138, %164 : vector<8x32xf32>
    %c6_i32 = arith.constant 6 : i32
    %166 = arith.index_cast %c6_i32 : i32 to index
    %c0_39 = arith.constant 0 : index
    %c0_40 = arith.constant 0 : index
    %167 = vector.load %arg1[%166, %c0_39, %c0_40] : memref<8x8x128xf32, #tpu.memory_space<vmem>>, vector<1x8x128xf32>
    %168 = vector.shape_cast %167 : vector<1x8x128xf32> to vector<8x128xf32>
    %169 = arith.truncf %159 : vector<8x32xf32> to vector<8x32xbf16>
    %cst_41 = arith.constant dense<0.000000e+00> : vector<8x128xf32>
    %170 = tpu.matmul %169, %0, %cst_41 {dimension_numbers = #tpu.dot_dimension_numbers<[1], [0], [0], [1], [0, 0, 1, 1], [], []>} : vector<8x32xbf16>, vector<32x128xbf16>, vector<8x128xf32> -> vector<8x128xf32>
    %171 = arith.addf %168, %170 : vector<8x128xf32>
    %172 = arith.negf %171 : vector<8x128xf32>
    %173 = math.exp %172 : vector<8x128xf32>
    %cst_42 = arith.constant 1.000000e+00 : f32
    %174 = vector.broadcast %cst_42 : f32 to vector<8x128xf32>
    %175 = arith.addf %174, %173 : vector<8x128xf32>
    %176 = arith.divf %174, %175 : vector<8x128xf32>
    %177 = vector.extract_strided_slice %176 {offsets = [0, 0], sizes = [8, 32], strides = [1, 1]} : vector<8x128xf32> to vector<8x32xf32>
    %178 = vector.extract_strided_slice %176 {offsets = [0, 32], sizes = [8, 32], strides = [1, 1]} : vector<8x128xf32> to vector<8x32xf32>
    %179 = vector.extract_strided_slice %176 {offsets = [0, 96], sizes = [8, 32], strides = [1, 1]} : vector<8x128xf32> to vector<8x32xf32>
    %180 = vector.extract_strided_slice %171 {offsets = [0, 64], sizes = [8, 32], strides = [1, 1]} : vector<8x128xf32> to vector<8x32xf32>
    %181 = math.tanh %180 : vector<8x32xf32>
    %182 = arith.mulf %178, %157 : vector<8x32xf32>
    %183 = arith.mulf %177, %181 : vector<8x32xf32>
    %184 = arith.addf %182, %183 : vector<8x32xf32>
    %185 = math.tanh %184 : vector<8x32xf32>
    %186 = arith.mulf %179, %185 : vector<8x32xf32>
    %187 = arith.index_cast %c6_i32 : i32 to index
    %c0_43 = arith.constant 0 : index
    %c0_44 = arith.constant 0 : index
    %188 = vector.load %arg0[%187, %c0_43, %c0_44] : memref<8x8x1xf32, #tpu.memory_space<vmem>>, vector<1x8x1xf32>
    %189 = vector.shape_cast %188 : vector<1x8x1xf32> to vector<8x1xf32>
    %190 = vector.broadcast %189 : vector<8x1xf32> to vector<8x32xf32>
    %191 = arith.mulf %190, %186 : vector<8x32xf32>
    %192 = arith.addf %165, %191 : vector<8x32xf32>
    %c7_i32 = arith.constant 7 : i32
    %193 = arith.index_cast %c7_i32 : i32 to index
    %c0_45 = arith.constant 0 : index
    %c0_46 = arith.constant 0 : index
    %194 = vector.load %arg1[%193, %c0_45, %c0_46] : memref<8x8x128xf32, #tpu.memory_space<vmem>>, vector<1x8x128xf32>
    %195 = vector.shape_cast %194 : vector<1x8x128xf32> to vector<8x128xf32>
    %196 = arith.truncf %186 : vector<8x32xf32> to vector<8x32xbf16>
    %cst_47 = arith.constant dense<0.000000e+00> : vector<8x128xf32>
    %197 = tpu.matmul %196, %0, %cst_47 {dimension_numbers = #tpu.dot_dimension_numbers<[1], [0], [0], [1], [0, 0, 1, 1], [], []>} : vector<8x32xbf16>, vector<32x128xbf16>, vector<8x128xf32> -> vector<8x128xf32>
    %198 = arith.addf %195, %197 : vector<8x128xf32>
    %199 = arith.negf %198 : vector<8x128xf32>
    %200 = math.exp %199 : vector<8x128xf32>
    %cst_48 = arith.constant 1.000000e+00 : f32
    %201 = vector.broadcast %cst_48 : f32 to vector<8x128xf32>
    %202 = arith.addf %201, %200 : vector<8x128xf32>
    %203 = arith.divf %201, %202 : vector<8x128xf32>
    %204 = vector.extract_strided_slice %203 {offsets = [0, 0], sizes = [8, 32], strides = [1, 1]} : vector<8x128xf32> to vector<8x32xf32>
    %205 = vector.extract_strided_slice %203 {offsets = [0, 32], sizes = [8, 32], strides = [1, 1]} : vector<8x128xf32> to vector<8x32xf32>
    %206 = vector.extract_strided_slice %203 {offsets = [0, 96], sizes = [8, 32], strides = [1, 1]} : vector<8x128xf32> to vector<8x32xf32>
    %207 = vector.extract_strided_slice %198 {offsets = [0, 64], sizes = [8, 32], strides = [1, 1]} : vector<8x128xf32> to vector<8x32xf32>
    %208 = math.tanh %207 : vector<8x32xf32>
    %209 = arith.mulf %205, %184 : vector<8x32xf32>
    %210 = arith.mulf %204, %208 : vector<8x32xf32>
    %211 = arith.addf %209, %210 : vector<8x32xf32>
    %212 = math.tanh %211 : vector<8x32xf32>
    %213 = arith.mulf %206, %212 : vector<8x32xf32>
    %214 = arith.index_cast %c7_i32 : i32 to index
    %c0_49 = arith.constant 0 : index
    %c0_50 = arith.constant 0 : index
    %215 = vector.load %arg0[%214, %c0_49, %c0_50] : memref<8x8x1xf32, #tpu.memory_space<vmem>>, vector<1x8x1xf32>
    %216 = vector.shape_cast %215 : vector<1x8x1xf32> to vector<8x1xf32>
    %217 = vector.broadcast %216 : vector<8x1xf32> to vector<8x32xf32>
    %218 = arith.mulf %217, %213 : vector<8x32xf32>
    %219 = arith.addf %192, %218 : vector<8x32xf32>
    %c8_i32 = arith.constant 8 : i32
    %cst_51 = arith.constant 0.000000e+00 : f32
    %220 = vector.broadcast %cst_51 : f32 to vector<8x32xf32>
    %221 = arith.maximumf %219, %220 : vector<8x32xf32>
    %c0_52 = arith.constant 0 : index
    %c0_53 = arith.constant 0 : index
    %222 = vector.load %arg3[%c0_52, %c0_53] : memref<32x32xf32, #tpu.memory_space<vmem>>, vector<32x32xf32>
    %cst_54 = arith.constant dense<0.000000e+00> : vector<8x32xf32>
    %223 = tpu.matmul %221, %222, %cst_54 {dimension_numbers = #tpu.dot_dimension_numbers<[1], [0], [0], [1], [0, 0, 1, 1], [], []>} : vector<8x32xf32>, vector<32x32xf32>, vector<8x32xf32> -> vector<8x32xf32>
    %c0_55 = arith.constant 0 : index
    %c0_56 = arith.constant 0 : index
    %224 = vector.load %arg4[%c0_55, %c0_56] : memref<1x32xf32, #tpu.memory_space<vmem>>, vector<1x32xf32>
    %225 = vector.broadcast %224 : vector<1x32xf32> to vector<8x32xf32>
    %226 = arith.addf %223, %225 : vector<8x32xf32>
    %cst_57 = arith.constant 0.000000e+00 : f32
    %227 = vector.broadcast %cst_57 : f32 to vector<8x32xf32>
    %228 = arith.maximumf %226, %227 : vector<8x32xf32>
    %c0_58 = arith.constant 0 : index
    %c0_59 = arith.constant 0 : index
    %229 = vector.load %arg5[%c0_58, %c0_59] : memref<32x128xf32, #tpu.memory_space<vmem>>, vector<32x128xf32>
    %cst_60 = arith.constant dense<0.000000e+00> : vector<8x128xf32>
    %230 = tpu.matmul %228, %229, %cst_60 {dimension_numbers = #tpu.dot_dimension_numbers<[1], [0], [0], [1], [0, 0, 1, 1], [], []>} : vector<8x32xf32>, vector<32x128xf32>, vector<8x128xf32> -> vector<8x128xf32>
    %c0_61 = arith.constant 0 : index
    %c0_62 = arith.constant 0 : index
    %231 = vector.load %arg6[%c0_61, %c0_62] : memref<8x128xf32, #tpu.memory_space<vmem>>, vector<8x128xf32>
    tpu.vector_store %arg6[%c0_61, %c0_62], %230 {strides = array<i32>} : memref<8x128xf32, #tpu.memory_space<vmem>>, vector<8x128xf32>,
    return
  }
}

</mosaic_0001>

<llo_original>
// kernel: lstmdqn_forward.1
$region0: #{lstmdqn_forward.1}
  #allocation0 [shape = 'u32[]', space=smem, size = 0x4, offset = 0x4, fixed_abs, tag = 'smem constant byte address 0x4 - core index']
  #allocation1 [shape = 'u32[144,128]{1,0:T(1,128)}', space=vmem, size = 0x12000, scoped, tag = 'internal scratch']
  %s0 = inlined_call_operand.vmem [shape: f32[8,8,1], index: 0, kind: input, shape index: {}]
  %s1 = inlined_call_operand.vmem [shape: f32[8,8,128], index: 1, kind: input, shape index: {}]
  %s2 = inlined_call_operand.vmem [shape: bf16[32,128], index: 2, kind: input, shape index: {}]
  %s3 = inlined_call_operand.vmem [shape: f32[32,32], index: 3, kind: input, shape index: {}]
  %s4 = inlined_call_operand.vmem [shape: f32[1,32], index: 4, kind: input, shape index: {}]
  %s5 = inlined_call_operand.vmem [shape: f32[32,128], index: 5, kind: input, shape index: {}]
  %s6 = inlined_call_operand.vmem [shape: f32[8,128], index: 6, kind: output, shape index: {}]
  %s7 = sld [smem:[#allocation0]]
  $region34: #{lstmdqn_forward.1} parent=0
    _
  %s9 = ssub.s32 1, %s7
  %s10 = scalar_select 0, %s9, %s7
  // Predicated region
  $region2: #{lstmdqn_forward.1} parent=0 // pred_check
    _
  $region3: #{lstmdqn_forward.1} parent=0 // pred_check_branch
    %12 = sbr.rel (0) target = $region5
  $region4: #{lstmdqn_forward.1} parent=0 // pred_region
    _
  $region5: #{lstmdqn_forward.1} parent=0 // pred_fallthru
    _
  // Predicated region
  $region6: #{lstmdqn_forward.1} parent=0 // pred_check
    _
  $region7: #{lstmdqn_forward.1} parent=0 // pred_check_branch
    %14 = sbr.rel (0) target = $region9
  $region8: #{lstmdqn_forward.1} parent=0 // pred_region
    _
  $region9: #{lstmdqn_forward.1} parent=0 // pred_fallthru
    _
  // Predicated region
  $region10: #{lstmdqn_forward.1} parent=0 // pred_check
    _
  $region11: #{lstmdqn_forward.1} parent=0 // pred_check_branch
    %16 = sbr.rel (0) target = $region13
  $region12: #{lstmdqn_forward.1} parent=0 // pred_region
    _
  $region13: #{lstmdqn_forward.1} parent=0 // pred_fallthru
    _
  // Predicated region
  $region14: #{lstmdqn_forward.1} parent=0 // pred_check
    _
  $region15: #{lstmdqn_forward.1} parent=0 // pred_check_branch
    %18 = sbr.rel (0) target = $region17
  $region16: #{lstmdqn_forward.1} parent=0 // pred_region
    _
  $region17: #{lstmdqn_forward.1} parent=0 // pred_fallthru
    _
  // Predicated region
  $region18: #{lstmdqn_forward.1} parent=0 // pred_check
    _
  $region19: #{lstmdqn_forward.1} parent=0 // pred_check_branch
    %20 = sbr.rel (0) target = $region21
  $region20: #{lstmdqn_forward.1} parent=0 // pred_region
    _
  $region21: #{lstmdqn_forward.1} parent=0 // pred_fallthru
    _
  // Predicated region
  $region22: #{lstmdqn_forward.1} parent=0 // pred_check
    _
  $region23: #{lstmdqn_forward.1} parent=0 // pred_check_branch
    %22 = sbr.rel (0) target = $region25
  $region24: #{lstmdqn_forward.1} parent=0 // pred_region
    _
  $region25: #{lstmdqn_forward.1} parent=0 // pred_fallthru
    _
  %v24 = vld [vmem:[%s2] sm:$0xf]
  %v25 = vld [vmem:[%s2 + $0x4] sm:$0xf]
  %v26 = vld [vmem:[%s2 + $0x8] sm:$0xf]
  %v27 = vld [vmem:[%s2 + $0xc] sm:$0xf]
  %v28 = vld [vmem:[%s1] sm:$0xff]
  %v33 = vunpack.c.l.b16 %v24
  %v34 = vunpack.c.l.b16 %v25
  %v35 = vunpack.c.l.b16 %v26
  %v36 = vunpack.c.l.b16 %v27
  %v37 = vpack.c.b16 %v34, %v33
  %v38 = vpack.c.b16 %v36, %v35
  %vm41 = vcmask 261120
  %v43 = vsel %vm41, 0, 0
  %45 = vmatprep.subr.bf16.mxu0 0
  %46 = vmatpush1.bf16.msra.mxu0 0
  %47 = vmatprep.subr.bf16.mxu0 0
  %48 = vmatpush1.bf16.msra.mxu0 0
  %49 = vmatprep.subr.bf16.mxu0 0
  %50 = vmatpush1.bf16.msra.mxu0 0
  %51 = vmatprep.subr.bf16.mxu0 0
  %52 = vmatpush1.bf16.msra.mxu0 0
  %53 = vmatprep.subr.bf16.mxu0 0
  %54 = vmatpush1.bf16.msra.mxu0 0
  %55 = vmatprep.subr.bf16.mxu0 0
  %56 = vmatpush1.bf16.msra.mxu0 0
  %57 = vmatprep.subr.bf16.mxu0 0
  %58 = vmatpush1.bf16.msra.mxu0 %v38
  %59 = vmatprep.subr.bf16.mxu0 0
  %60 = vmatpush1.bf16.msra.mxu0 %v37
  %61 = vmatprep.subr.bf16.mxu0 0
  %62 = vmatpush2.bf16.msra.mxu0 0
  %63 = vmatprep.subr.bf16.mxu0 0
  %64 = vmatpush2.bf16.msra.mxu0 0
  %65 = vmatprep.subr.bf16.mxu0 0
  %66 = vmatpush2.bf16.msra.mxu0 0
  %67 = vmatprep.subr.bf16.mxu0 0
  %68 = vmatpush2.bf16.msra.mxu0 0
  %69 = vmatprep.subr.bf16.mxu0 0
  %70 = vmatpush2.bf16.msra.mxu0 0
  %71 = vmatprep.subr.bf16.mxu0 0
  %72 = vmatpush2.bf16.msra.mxu0 0
  %73 = vmatprep.subr.bf16.mxu0 0
  %74 = vmatpush2.bf16.msra.mxu0 0
  %75 = vmatprep.subr.bf16.mxu0 0
  %76 = vmatpush2.bf16.msra.mxu0 0
  %77 = vmatprep.mubr.bf16.mxu0 0
  %78 = vmatmul.mubr.bf16.gmra.mxu0 %v43
  %v79 = vpop.f32.mrf.mxu0
  %v80 = vadd.f32 0.0, %v79
  %v81 = vpop.f32.mrf.mxu0
  %v82 = vpop.f32.mrf.mxu0
  %v83 = vpop.f32.mrf.mxu0
  %84 = vdwg.mxu0
  %v85 = vadd.f32 %v28, %v80
  %v86 = vxor.u32 %v85, 2147483648
  %v87 = vmul.f32 %v86, 1.442695
  %v88 = vpow.pop %v87
  %v89 = vadd.f32 %v88, 1.0
  %v90 = vrcp.pop %v89
  %v91 = vmul.f32 1.0, %v90
  %v92 = vtanh.pop %v85
  %v93 = vmul.f32 %v91, 0.0
  %95 = vrot.lane.b32.xlu0 %v92, 64
  %v96 = vpop.permute.xlu0 %95
  %v98 = vmul.f32 %v91, %v96
  %100 = vrot.lane.b32.xlu0 %v98, 32
  %v101 = vpop.permute.xlu0 %100
  %v103 = vadd.f32 %v93, %v101
  %v104 = vtanh.pop %v103
  %106 = vrot.lane.b32.xlu0 %v104, 64
  %v107 = vpop.permute.xlu0 %106
  %v109 = vmul.f32 %v91, %v107
  %v110 = vld [vmem:[%s0] sm:$0xff]
  %112 = vset.pattern.permute.xlu0 0
  %113 = vperm.xlu0 %112, %v110
  %v114 = vpop.permute.xlu0 %113
  %v116 = vmul.f32 %v114, %v109
  %v117 = vadd.f32 %v116, 0.0
  %s118 = scalar_lea.vmem %s1, 8
  %v119 = vld [vmem:[%s118] sm:$0xff]
  %v120 = vpack.c.bf16 %v109, %v109
  %122 = vrot.lane.b32.xlu0 %v120, 32
  %v123 = vpop.permute.xlu0 %122
  %v125 = vsel %vm41, %v123, 0
  %127 = vmatprep.subr.bf16.mxu0 0
  %128 = vmatpush1.bf16.msra.mxu0 0
  %129 = vmatprep.subr.bf16.mxu0 0
  %130 = vmatpush1.bf16.msra.mxu0 0
  %131 = vmatprep.subr.bf16.mxu0 0
  %132 = vmatpush1.bf16.msra.mxu0 0
  %133 = vmatprep.subr.bf16.mxu0 0
  %134 = vmatpush1.bf16.msra.mxu0 0
  %135 = vmatprep.subr.bf16.mxu0 0
  %136 = vmatpush1.bf16.msra.mxu0 0
  %137 = vmatprep.subr.bf16.mxu0 0
  %138 = vmatpush1.bf16.msra.mxu0 0
  %139 = vmatprep.subr.bf16.mxu0 0
  %140 = vmatpush1.bf16.msra.mxu0 %v38
  %141 = vmatprep.subr.bf16.mxu0 0
  %142 = vmatpush1.bf16.msra.mxu0 %v37
  %143 = vmatprep.subr.bf16.mxu0 0
  %144 = vmatpush2.bf16.msra.mxu0 0
  %145 = vmatprep.subr.bf16.mxu0 0
  %146 = vmatpush2.bf16.msra.mxu0 0
  %147 = vmatprep.subr.bf16.mxu0 0
  %148 = vmatpush2.bf16.msra.mxu0 0
  %149 = vmatprep.subr.bf16.mxu0 0
  %150 = vmatpush2.bf16.msra.mxu0 0
  %151 = vmatprep.subr.bf16.mxu0 0
  %152 = vmatpush2.bf16.msra.mxu0 0
  %153 = vmatprep.subr.bf16.mxu0 0
  %154 = vmatpush2.bf16.msra.mxu0 0
  %155 = vmatprep.subr.bf16.mxu0 0
  %156 = vmatpush2.bf16.msra.mxu0 0
  %157 = vmatprep.subr.bf16.mxu0 0
  %158 = vmatpush2.bf16.msra.mxu0 0
  %159 = vmatprep.mubr.bf16.mxu0 0
  %160 = vmatmul.mubr.bf16.gmra.mxu0 %v125
  %v161 = vpop.f32.mrf.mxu0
  %v162 = vadd.f32 0.0, %v161
  %v163 = vpop.f32.mrf.mxu0
  %v164 = vpop.f32.mrf.mxu0
  %v165 = vpop.f32.mrf.mxu0
  %166 = vdwg.mxu0
  %v167 = vadd.f32 %v119, %v162
  %v168 = vxor.u32 %v167, 2147483648
  %v169 = vmul.f32 %v168, 1.442695
  %v170 = vpow.pop %v169
  %v171 = vadd.f32 %v170, 1.0
  %v172 = vrcp.pop %v171
  %v173 = vmul.f32 1.0, %v172
  %v174 = vtanh.pop %v167
  %v175 = vmul.f32 %v173, %v103
  %177 = vrot.lane.b32.xlu0 %v174, 64
  %v178 = vpop.permute.xlu0 %177
  %v180 = vmul.f32 %v173, %v178
  %182 = vrot.lane.b32.xlu0 %v180, 32
  %v183 = vpop.permute.xlu0 %182
  %v185 = vadd.f32 %v175, %v183
  %v186 = vtanh.pop %v185
  %188 = vrot.lane.b32.xlu0 %v186, 64
  %v189 = vpop.permute.xlu0 %188
  %v191 = vmul.f32 %v173, %v189
  %s192 = scalar_lea.vmem %s0, 8
  %v193 = vld [vmem:[%s192] sm:$0xff]
  %195 = vset.pattern.permute.xlu0 0
  %196 = vperm.xlu0 %195, %v193
  %v197 = vpop.permute.xlu0 %196
  %v199 = vmul.f32 %v197, %v191
  %v200 = vadd.f32 %v117, %v199
  %s201 = scalar_lea.vmem %s1, 16
  %v202 = vld [vmem:[%s201] sm:$0xff]
  %v203 = vpack.c.bf16 %v191, %v191
  %205 = vrot.lane.b32.xlu0 %v203, 32
  %v206 = vpop.permute.xlu0 %205
  %v208 = vsel %vm41, %v206, 0
  %210 = vmatprep.subr.bf16.mxu0 0
  %211 = vmatpush1.bf16.msra.mxu0 0
  %212 = vmatprep.subr.bf16.mxu0 0
  %213 = vmatpush1.bf16.msra.mxu0 0
  %214 = vmatprep.subr.bf16.mxu0 0
  %215 = vmatpush1.bf16.msra.mxu0 0
  %216 = vmatprep.subr.bf16.mxu0 0
  %217 = vmatpush1.bf16.msra.mxu0 0
  %218 = vmatprep.subr.bf16.mxu0 0
  %219 = vmatpush1.bf16.msra.mxu0 0
  %220 = vmatprep.subr.bf16.mxu0 0
  %221 = vmatpush1.bf16.msra.mxu0 0
  %222 = vmatprep.subr.bf16.mxu0 0
  %223 = vmatpush1.bf16.msra.mxu0 %v38
  %224 = vmatprep.subr.bf16.mxu0 0
  %225 = vmatpush1.bf16.msra.mxu0 %v37
  %226 = vmatprep.subr.bf16.mxu0 0
  %227 = vmatpush2.bf16.msra.mxu0 0
  %228 = vmatprep.subr.bf16.mxu0 0
  %229 = vmatpush2.bf16.msra.mxu0 0
  %230 = vmatprep.subr.bf16.mxu0 0
  %231 = vmatpush2.bf16.msra.mxu0 0
  %232 = vmatprep.subr.bf16.mxu0 0
  %233 = vmatpush2.bf16.msra.mxu0 0
  %234 = vmatprep.subr.bf16.mxu0 0
  %235 = vmatpush2.bf16.msra.mxu0 0
  %236 = vmatprep.subr.bf16.mxu0 0
  %237 = vmatpush2.bf16.msra.mxu0 0
  %238 = vmatprep.subr.bf16.mxu0 0
  %239 = vmatpush2.bf16.msra.mxu0 0
  %240 = vmatprep.subr.bf16.mxu0 0
  %241 = vmatpush2.bf16.msra.mxu0 0
  %242 = vmatprep.mubr.bf16.mxu0 0
  %243 = vmatmul.mubr.bf16.gmra.mxu0 %v208
  %v244 = vpop.f32.mrf.mxu0
  %v245 = vadd.f32 0.0, %v244
  %v246 = vpop.f32.mrf.mxu0
  %v247 = vpop.f32.mrf.mxu0
  %v248 = vpop.f32.mrf.mxu0
  %249 = vdwg.mxu0
  %v250 = vadd.f32 %v202, %v245
  %v251 = vxor.u32 %v250, 2147483648
  %v252 = vmul.f32 %v251, 1.442695
  %v253 = vpow.pop %v252
  %v254 = vadd.f32 %v253, 1.0
  %v255 = vrcp.pop %v254
  %v256 = vmul.f32 1.0, %v255
  %v257 = vtanh.pop %v250
  %v258 = vmul.f32 %v256, %v185
  %260 = vrot.lane.b32.xlu0 %v257, 64
  %v261 = vpop.permute.xlu0 %260
  %v263 = vmul.f32 %v256, %v261
  %265 = vrot.lane.b32.xlu0 %v263, 32
  %v266 = vpop.permute.xlu0 %265
  %v268 = vadd.f32 %v258, %v266
  %v269 = vtanh.pop %v268
  %271 = vrot.lane.b32.xlu0 %v269, 64
  %v272 = vpop.permute.xlu0 %271
  %v274 = vmul.f32 %v256, %v272
  %s275 = scalar_lea.vmem %s0, 16
  %v276 = vld [vmem:[%s275] sm:$0xff]
  %278 = vset.pattern.permute.xlu0 0
  %279 = vperm.xlu0 %278, %v276
  %v280 = vpop.permute.xlu0 %279
  %v282 = vmul.f32 %v280, %v274
  %v283 = vadd.f32 %v200, %v282
  %s284 = scalar_lea.vmem %s1, 24
  %v285 = vld [vmem:[%s284] sm:$0xff]
  %v286 = vpack.c.bf16 %v274, %v274
  %288 = vrot.lane.b32.xlu0 %v286, 32
  %v289 = vpop.permute.xlu0 %288
  %v291 = vsel %vm41, %v289, 0
  %293 = vmatprep.subr.bf16.mxu0 0
  %294 = vmatpush1.bf16.msra.mxu0 0
  %295 = vmatprep.subr.bf16.mxu0 0
  %296 = vmatpush1.bf16.msra.mxu0 0
  %297 = vmatprep.subr.bf16.mxu0 0
  %298 = vmatpush1.bf16.msra.mxu0 0
  %299 = vmatprep.subr.bf16.mxu0 0
  %300 = vmatpush1.bf16.msra.mxu0 0
  %301 = vmatprep.subr.bf16.mxu0 0
  %302 = vmatpush1.bf16.msra.mxu0 0
  %303 = vmatprep.subr.bf16.mxu0 0
  %304 = vmatpush1.bf16.msra.mxu0 0
  %305 = vmatprep.subr.bf16.mxu0 0
  %306 = vmatpush1.bf16.msra.mxu0 %v38
  %307 = vmatprep.subr.bf16.mxu0 0
  %308 = vmatpush1.bf16.msra.mxu0 %v37
  %309 = vmatprep.subr.bf16.mxu0 0
  %310 = vmatpush2.bf16.msra.mxu0 0
  %311 = vmatprep.subr.bf16.mxu0 0
  %312 = vmatpush2.bf16.msra.mxu0 0
  %313 = vmatprep.subr.bf16.mxu0 0
  %314 = vmatpush2.bf16.msra.mxu0 0
  %315 = vmatprep.subr.bf16.mxu0 0
  %316 = vmatpush2.bf16.msra.mxu0 0
  %317 = vmatprep.subr.bf16.mxu0 0
  %318 = vmatpush2.bf16.msra.mxu0 0
  %319 = vmatprep.subr.bf16.mxu0 0
  %320 = vmatpush2.bf16.msra.mxu0 0
  %321 = vmatprep.subr.bf16.mxu0 0
  %322 = vmatpush2.bf16.msra.mxu0 0
  %323 = vmatprep.subr.bf16.mxu0 0
  %324 = vmatpush2.bf16.msra.mxu0 0
  %325 = vmatprep.mubr.bf16.mxu0 0
  %326 = vmatmul.mubr.bf16.gmra.mxu0 %v291
  %v327 = vpop.f32.mrf.mxu0
  %v328 = vadd.f32 0.0, %v327
  %v329 = vpop.f32.mrf.mxu0
  %v330 = vpop.f32.mrf.mxu0
  %v331 = vpop.f32.mrf.mxu0
  %332 = vdwg.mxu0
  %v333 = vadd.f32 %v285, %v328
  %v334 = vxor.u32 %v333, 2147483648
  %v335 = vmul.f32 %v334, 1.442695
  %v336 = vpow.pop %v335
  %v337 = vadd.f32 %v336, 1.0
  %v338 = vrcp.pop %v337
  %v339 = vmul.f32 1.0, %v338
  %v340 = vtanh.pop %v333
  %v341 = vmul.f32 %v339, %v268
  %343 = vrot.lane.b32.xlu0 %v340, 64
  %v344 = vpop.permute.xlu0 %343
  %v346 = vmul.f32 %v339, %v344
  %348 = vrot.lane.b32.xlu0 %v346, 32
  %v349 = vpop.permute.xlu0 %348
  %v351 = vadd.f32 %v341, %v349
  %v352 = vtanh.pop %v351
  %354 = vrot.lane.b32.xlu0 %v352, 64
  %v355 = vpop.permute.xlu0 %354
  %v357 = vmul.f32 %v339, %v355
  %s358 = scalar_lea.vmem %s0, 24
  %v359 = vld [vmem:[%s358] sm:$0xff]
  %361 = vset.pattern.permute.xlu0 0
  %362 = vperm.xlu0 %361, %v359
  %v363 = vpop.permute.xlu0 %362
  %v365 = vmul.f32 %v363, %v357
  %v366 = vadd.f32 %v283, %v365
  %s367 = scalar_lea.vmem %s1, 32
  %v368 = vld [vmem:[%s367] sm:$0xff]
  %v369 = vpack.c.bf16 %v357, %v357
  %371 = vrot.lane.b32.xlu0 %v369, 32
  %v372 = vpop.permute.xlu0 %371
  %v374 = vsel %vm41, %v372, 0
  %376 = vmatprep.subr.bf16.mxu0 0
  %377 = vmatpush1.bf16.msra.mxu0 0
  %378 = vmatprep.subr.bf16.mxu0 0
  %379 = vmatpush1.bf16.msra.mxu0 0
  %380 = vmatprep.subr.bf16.mxu0 0
  %381 = vmatpush1.bf16.msra.mxu0 0
  %382 = vmatprep.subr.bf16.mxu0 0
  %383 = vmatpush1.bf16.msra.mxu0 0
  %384 = vmatprep.subr.bf16.mxu0 0
  %385 = vmatpush1.bf16.msra.mxu0 0
  %386 = vmatprep.subr.bf16.mxu0 0
  %387 = vmatpush1.bf16.msra.mxu0 0
  %388 = vmatprep.subr.bf16.mxu0 0
  %389 = vmatpush1.bf16.msra.mxu0 %v38
  %390 = vmatprep.subr.bf16.mxu0 0
  %391 = vmatpush1.bf16.msra.mxu0 %v37
  %392 = vmatprep.subr.bf16.mxu0 0
  %393 = vmatpush2.bf16.msra.mxu0 0
  %394 = vmatprep.subr.bf16.mxu0 0
  %395 = vmatpush2.bf16.msra.mxu0 0
  %396 = vmatprep.subr.bf16.mxu0 0
  %397 = vmatpush2.bf16.msra.mxu0 0
  %398 = vmatprep.subr.bf16.mxu0 0
  %399 = vmatpush2.bf16.msra.mxu0 0
  %400 = vmatprep.subr.bf16.mxu0 0
  %401 = vmatpush2.bf16.msra.mxu0 0
  %402 = vmatprep.subr.bf16.mxu0 0
  %403 = vmatpush2.bf16.msra.mxu0 0
  %404 = vmatprep.subr.bf16.mxu0 0
  %405 = vmatpush2.bf16.msra.mxu0 0
  %406 = vmatprep.subr.bf16.mxu0 0
  %407 = vmatpush2.bf16.msra.mxu0 0
  %408 = vmatprep.mubr.bf16.mxu0 0
  %409 = vmatmul.mubr.bf16.gmra.mxu0 %v374
  %v410 = vpop.f32.mrf.mxu0
  %v411 = vadd.f32 0.0, %v410
  %v412 = vpop.f32.mrf.mxu0
  %v413 = vpop.f32.mrf.mxu0
  %v414 = vpop.f32.mrf.mxu0
  %415 = vdwg.mxu0
  %v416 = vadd.f32 %v368, %v411
  %v417 = vxor.u32 %v416, 2147483648
  %v418 = vmul.f32 %v417, 1.442695
  %v419 = vpow.pop %v418
  %v420 = vadd.f32 %v419, 1.0
  %v421 = vrcp.pop %v420
  %v422 = vmul.f32 1.0, %v421
  %v423 = vtanh.pop %v416
  %v424 = vmul.f32 %v422, %v351
  %426 = vrot.lane.b32.xlu0 %v423, 64
  %v427 = vpop.permute.xlu0 %426
  %v429 = vmul.f32 %v422, %v427
  %431 = vrot.lane.b32.xlu0 %v429, 32
  %v432 = vpop.permute.xlu0 %431
  %v434 = vadd.f32 %v424, %v432
  %v435 = vtanh.pop %v434
  %437 = vrot.lane.b32.xlu0 %v435, 64
  %v438 = vpop.permute.xlu0 %437
  %v440 = vmul.f32 %v422, %v438
  %s441 = scalar_lea.vmem %s0, 32
  %v442 = vld [vmem:[%s441] sm:$0xff]
  %444 = vset.pattern.permute.xlu0 0
  %445 = vperm.xlu0 %444, %v442
  %v446 = vpop.permute.xlu0 %445
  %v448 = vmul.f32 %v446, %v440
  %v449 = vadd.f32 %v366, %v448
  %s450 = scalar_lea.vmem %s1, 40
  %v451 = vld [vmem:[%s450] sm:$0xff]
  %v452 = vpack.c.bf16 %v440, %v440
  %454 = vrot.lane.b32.xlu0 %v452, 32
  %v455 = vpop.permute.xlu0 %454
  %v457 = vsel %vm41, %v455, 0
  %459 = vmatprep.subr.bf16.mxu0 0
  %460 = vmatpush1.bf16.msra.mxu0 0
  %461 = vmatprep.subr.bf16.mxu0 0
  %462 = vmatpush1.bf16.msra.mxu0 0
  %463 = vmatprep.subr.bf16.mxu0 0
  %464 = vmatpush1.bf16.msra.mxu0 0
  %465 = vmatprep.subr.bf16.mxu0 0
  %466 = vmatpush1.bf16.msra.mxu0 0
  %467 = vmatprep.subr.bf16.mxu0 0
  %468 = vmatpush1.bf16.msra.mxu0 0
  %469 = vmatprep.subr.bf16.mxu0 0
  %470 = vmatpush1.bf16.msra.mxu0 0
  %471 = vmatprep.subr.bf16.mxu0 0
  %472 = vmatpush1.bf16.msra.mxu0 %v38
  %473 = vmatprep.subr.bf16.mxu0 0
  %474 = vmatpush1.bf16.msra.mxu0 %v37
  %475 = vmatprep.subr.bf16.mxu0 0
  %476 = vmatpush2.bf16.msra.mxu0 0
  %477 = vmatprep.subr.bf16.mxu0 0
  %478 = vmatpush2.bf16.msra.mxu0 0
  %479 = vmatprep.subr.bf16.mxu0 0
  %480 = vmatpush2.bf16.msra.mxu0 0
  %481 = vmatprep.subr.bf16.mxu0 0
  %482 = vmatpush2.bf16.msra.mxu0 0
  %483 = vmatprep.subr.bf16.mxu0 0
  %484 = vmatpush2.bf16.msra.mxu0 0
  %485 = vmatprep.subr.bf16.mxu0 0
  %486 = vmatpush2.bf16.msra.mxu0 0
  %487 = vmatprep.subr.bf16.mxu0 0
  %488 = vmatpush2.bf16.msra.mxu0 0
  %489 = vmatprep.subr.bf16.mxu0 0
  %490 = vmatpush2.bf16.msra.mxu0 0
  %491 = vmatprep.mubr.bf16.mxu0 0
  %492 = vmatmul.mubr.bf16.gmra.mxu0 %v457
  %v493 = vpop.f32.mrf.mxu0
  %v494 = vadd.f32 0.0, %v493
  %v495 = vpop.f32.mrf.mxu0
  %v496 = vpop.f32.mrf.mxu0
  %v497 = vpop.f32.mrf.mxu0
  %498 = vdwg.mxu0
  %v499 = vadd.f32 %v451, %v494
  %v500 = vxor.u32 %v499, 2147483648
  %v501 = vmul.f32 %v500, 1.442695
  %v502 = vpow.pop %v501
  %v503 = vadd.f32 %v502, 1.0
  %v504 = vrcp.pop %v503
  %v505 = vmul.f32 1.0, %v504
  %v506 = vtanh.pop %v499
  %v507 = vmul.f32 %v505, %v434
  %509 = vrot.lane.b32.xlu0 %v506, 64
  %v510 = vpop.permute.xlu0 %509
  %v512 = vmul.f32 %v505, %v510
  %514 = vrot.lane.b32.xlu0 %v512, 32
  %v515 = vpop.permute.xlu0 %514
  %v517 = vadd.f32 %v507, %v515
  %v518 = vtanh.pop %v517
  %520 = vrot.lane.b32.xlu0 %v518, 64
  %v521 = vpop.permute.xlu0 %520
  %v523 = vmul.f32 %v505, %v521
  %s524 = scalar_lea.vmem %s0, 40
  %v525 = vld [vmem:[%s524] sm:$0xff]
  %527 = vset.pattern.permute.xlu0 0
  %528 = vperm.xlu0 %527, %v525
  %v529 = vpop.permute.xlu0 %528
  %v531 = vmul.f32 %v529, %v523
  %v532 = vadd.f32 %v449, %v531
  %s533 = scalar_lea.vmem %s1, 48
  %v534 = vld [vmem:[%s533] sm:$0xff]
  %v535 = vpack.c.bf16 %v523, %v523
  %537 = vrot.lane.b32.xlu0 %v535, 32
  %v538 = vpop.permute.xlu0 %537
  %v540 = vsel %vm41, %v538, 0
  %542 = vmatprep.subr.bf16.mxu0 0
  %543 = vmatpush1.bf16.msra.mxu0 0
  %544 = vmatprep.subr.bf16.mxu0 0
  %545 = vmatpush1.bf16.msra.mxu0 0
  %546 = vmatprep.subr.bf16.mxu0 0
  %547 = vmatpush1.bf16.msra.mxu0 0
  %548 = vmatprep.subr.bf16.mxu0 0
  %549 = vmatpush1.bf16.msra.mxu0 0
  %550 = vmatprep.subr.bf16.mxu0 0
  %551 = vmatpush1.bf16.msra.mxu0 0
  %552 = vmatprep.subr.bf16.mxu0 0
  %553 = vmatpush1.bf16.msra.mxu0 0
  %554 = vmatprep.subr.bf16.mxu0 0
  %555 = vmatpush1.bf16.msra.mxu0 %v38
  %556 = vmatprep.subr.bf16.mxu0 0
  %557 = vmatpush1.bf16.msra.mxu0 %v37
  %558 = vmatprep.subr.bf16.mxu0 0
  %559 = vmatpush2.bf16.msra.mxu0 0
  %560 = vmatprep.subr.bf16.mxu0 0
  %561 = vmatpush2.bf16.msra.mxu0 0
  %562 = vmatprep.subr.bf16.mxu0 0
  %563 = vmatpush2.bf16.msra.mxu0 0
  %564 = vmatprep.subr.bf16.mxu0 0
  %565 = vmatpush2.bf16.msra.mxu0 0
  %566 = vmatprep.subr.bf16.mxu0 0
  %567 = vmatpush2.bf16.msra.mxu0 0
  %568 = vmatprep.subr.bf16.mxu0 0
  %569 = vmatpush2.bf16.msra.mxu0 0
  %570 = vmatprep.subr.bf16.mxu0 0
  %571 = vmatpush2.bf16.msra.mxu0 0
  %572 = vmatprep.subr.bf16.mxu0 0
  %573 = vmatpush2.bf16.msra.mxu0 0
  %574 = vmatprep.mubr.bf16.mxu0 0
  %575 = vmatmul.mubr.bf16.gmra.mxu0 %v540
  %v576 = vpop.f32.mrf.mxu0
  %v577 = vadd.f32 0.0, %v576
  %v578 = vpop.f32.mrf.mxu0
  %v579 = vpop.f32.mrf.mxu0
  %v580 = vpop.f32.mrf.mxu0
  %581 = vdwg.mxu0
  %v582 = vadd.f32 %v534, %v577
  %v583 = vxor.u32 %v582, 2147483648
  %v584 = vmul.f32 %v583, 1.442695
  %v585 = vpow.pop %v584
  %v586 = vadd.f32 %v585, 1.0
  %v587 = vrcp.pop %v586
  %v588 = vmul.f32 1.0, %v587
  %v589 = vtanh.pop %v582
  %v590 = vmul.f32 %v588, %v517
  %592 = vrot.lane.b32.xlu0 %v589, 64
  %v593 = vpop.permute.xlu0 %592
  %v595 = vmul.f32 %v588, %v593
  %597 = vrot.lane.b32.xlu0 %v595, 32
  %v598 = vpop.permute.xlu0 %597
  %v600 = vadd.f32 %v590, %v598
  %v601 = vtanh.pop %v600
  %603 = vrot.lane.b32.xlu0 %v601, 64
  %v604 = vpop.permute.xlu0 %603
  %v606 = vmul.f32 %v588, %v604
  %s607 = scalar_lea.vmem %s0, 48
  %v608 = vld [vmem:[%s607] sm:$0xff]
  %610 = vset.pattern.permute.xlu0 0
  %611 = vperm.xlu0 %610, %v608
  %v612 = vpop.permute.xlu0 %611
  %v614 = vmul.f32 %v612, %v606
  %v615 = vadd.f32 %v532, %v614
  %s616 = scalar_lea.vmem %s1, 56
  %v617 = vld [vmem:[%s616] sm:$0xff]
  %v618 = vpack.c.bf16 %v606, %v606
  %620 = vrot.lane.b32.xlu0 %v618, 32
  %v621 = vpop.permute.xlu0 %620
  %v623 = vsel %vm41, %v621, 0
  %625 = vmatprep.subr.bf16.mxu0 0
  %626 = vmatpush1.bf16.msra.mxu0 0
  %627 = vmatprep.subr.bf16.mxu0 0
  %628 = vmatpush1.bf16.msra.mxu0 0
  %629 = vmatprep.subr.bf16.mxu0 0
  %630 = vmatpush1.bf16.msra.mxu0 0
  %631 = vmatprep.subr.bf16.mxu0 0
  %632 = vmatpush1.bf16.msra.mxu0 0
  %633 = vmatprep.subr.bf16.mxu0 0
  %634 = vmatpush1.bf16.msra.mxu0 0
  %635 = vmatprep.subr.bf16.mxu0 0
  %636 = vmatpush1.bf16.msra.mxu0 0
  %637 = vmatprep.subr.bf16.mxu0 0
  %638 = vmatpush1.bf16.msra.mxu0 %v38
  %639 = vmatprep.subr.bf16.mxu0 0
  %640 = vmatpush1.bf16.msra.mxu0 %v37
  %641 = vmatprep.subr.bf16.mxu0 0
  %642 = vmatpush2.bf16.msra.mxu0 0
  %643 = vmatprep.subr.bf16.mxu0 0
  %644 = vmatpush2.bf16.msra.mxu0 0
  %645 = vmatprep.subr.bf16.mxu0 0
  %646 = vmatpush2.bf16.msra.mxu0 0
  %647 = vmatprep.subr.bf16.mxu0 0
  %648 = vmatpush2.bf16.msra.mxu0 0
  %649 = vmatprep.subr.bf16.mxu0 0
  %650 = vmatpush2.bf16.msra.mxu0 0
  %651 = vmatprep.subr.bf16.mxu0 0
  %652 = vmatpush2.bf16.msra.mxu0 0
  %653 = vmatprep.subr.bf16.mxu0 0
  %654 = vmatpush2.bf16.msra.mxu0 0
  %655 = vmatprep.subr.bf16.mxu0 0
  %656 = vmatpush2.bf16.msra.mxu0 0
  %657 = vmatprep.mubr.bf16.mxu0 0
  %658 = vmatmul.mubr.bf16.gmra.mxu0 %v623
  %v659 = vpop.f32.mrf.mxu0
  %v660 = vadd.f32 0.0, %v659
  %v661 = vpop.f32.mrf.mxu0
  %v662 = vpop.f32.mrf.mxu0
  %v663 = vpop.f32.mrf.mxu0
  %664 = vdwg.mxu0
  %v665 = vadd.f32 %v617, %v660
  %v666 = vxor.u32 %v665, 2147483648
  %v667 = vmul.f32 %v666, 1.442695
  %v668 = vpow.pop %v667
  %v669 = vadd.f32 %v668, 1.0
  %v670 = vrcp.pop %v669
  %v671 = vmul.f32 1.0, %v670
  %v672 = vtanh.pop %v665
  %v673 = vmul.f32 %v671, %v600
  %675 = vrot.lane.b32.xlu0 %v672, 64
  %v676 = vpop.permute.xlu0 %675
  %v678 = vmul.f32 %v671, %v676
  %680 = vrot.lane.b32.xlu0 %v678, 32
  %v681 = vpop.permute.xlu0 %680
  %v683 = vadd.f32 %v673, %v681
  %v684 = vtanh.pop %v683
  %686 = vrot.lane.b32.xlu0 %v684, 64
  %v687 = vpop.permute.xlu0 %686
  %v689 = vmul.f32 %v671, %v687
  %s690 = scalar_lea.vmem %s0, 56
  %v691 = vld [vmem:[%s690] sm:$0xff]
  %693 = vset.pattern.permute.xlu0 0
  %694 = vperm.xlu0 %693, %v691
  %v695 = vpop.permute.xlu0 %694
  %v697 = vmul.f32 %v695, %v689
  %v698 = vadd.f32 %v615, %v697
  %v699 = vmax.f32 %v698, 0.0
  %v700 = vld [vmem:[%s3] sm:$0xff]
  %v701 = vld [vmem:[%s3 + $0x8] sm:$0xff]
  %v702 = vld [vmem:[%s3 + $0x10] sm:$0xff]
  %v703 = vld [vmem:[%s3 + $0x18] sm:$0xff]
  %v704 = vld [vmem:[%s4] sm:$0x1]
  %v706 = vlaneseq
  %v707 = vshrl.u32 %v706, 7
  %v708 = vsub.s32 0, %v707
  %v709 = vrot.slane %v704, %v708
  %712 = vrot.lane.b32.xlu0 %v699, 32
  %v713 = vpop.permute.xlu0 %712
  %v714 = vsel %vm41, %v713, 0
  %716 = vmatprep.subr.mxu0 0.0
  %717 = vmatpush1.msra.mxu0 0.0
  %718 = vmatprep.subr.mxu0 0.0
  %719 = vmatpush1.msra.mxu0 0.0
  %720 = vmatprep.subr.mxu0 0.0
  %721 = vmatpush1.msra.mxu0 0.0
  %722 = vmatprep.subr.mxu0 0.0
  %723 = vmatpush1.msra.mxu0 0.0
  %724 = vmatprep.subr.mxu0 0.0
  %725 = vmatpush1.msra.mxu0 0.0
  %726 = vmatprep.subr.mxu0 0.0
  %727 = vmatpush1.msra.mxu0 0.0
  %728 = vmatprep.subr.mxu0 0.0
  %729 = vmatpush1.msra.mxu0 0.0
  %730 = vmatprep.subr.mxu0 0.0
  %731 = vmatpush1.msra.mxu0 0.0
  %732 = vmatprep.subr.mxu0 0.0
  %733 = vmatpush1.msra.mxu0 0.0
  %734 = vmatprep.subr.mxu0 0.0
  %735 = vmatpush1.msra.mxu0 0.0
  %736 = vmatprep.subr.mxu0 0.0
  %737 = vmatpush1.msra.mxu0 0.0
  %738 = vmatprep.subr.mxu0 0.0
  %739 = vmatpush1.msra.mxu0 0.0
  %740 = vmatprep.subr.mxu0 0.0
  %741 = vmatpush1.msra.mxu0 %v703
  %742 = vmatprep.subr.mxu0 0.0
  %743 = vmatpush1.msra.mxu0 %v702
  %744 = vmatprep.subr.mxu0 0.0
  %745 = vmatpush1.msra.mxu0 %v701
  %746 = vmatprep.subr.mxu0 0.0
  %747 = vmatpush1.msra.mxu0 %v700
  %748 = vmatprep.subr.mxu0 0.0
  %749 = vmatpush2.msra.mxu0 0.0
  %750 = vmatprep.subr.mxu0 0.0
  %751 = vmatpush2.msra.mxu0 0.0
  %752 = vmatprep.subr.mxu0 0.0
  %753 = vmatpush2.msra.mxu0 0.0
  %754 = vmatprep.subr.mxu0 0.0
  %755 = vmatpush2.msra.mxu0 0.0
  %756 = vmatprep.subr.mxu0 0.0
  %757 = vmatpush2.msra.mxu0 0.0
  %758 = vmatprep.subr.mxu0 0.0
  %759 = vmatpush2.msra.mxu0 0.0
  %760 = vmatprep.subr.mxu0 0.0
  %761 = vmatpush2.msra.mxu0 0.0
  %762 = vmatprep.subr.mxu0 0.0
  %763 = vmatpush2.msra.mxu0 0.0
  %764 = vmatprep.subr.mxu0 0.0
  %765 = vmatpush2.msra.mxu0 0.0
  %766 = vmatprep.subr.mxu0 0.0
  %767 = vmatpush2.msra.mxu0 0.0
  %768 = vmatprep.subr.mxu0 0.0
  %769 = vmatpush2.msra.mxu0 0.0
  %770 = vmatprep.subr.mxu0 0.0
  %771 = vmatpush2.msra.mxu0 0.0
  %772 = vmatprep.subr.mxu0 0.0
  %773 = vmatpush2.msra.mxu0 0.0
  %774 = vmatprep.subr.mxu0 0.0
  %775 = vmatpush2.msra.mxu0 0.0
  %776 = vmatprep.subr.mxu0 0.0
  %777 = vmatpush2.msra.mxu0 0.0
  %778 = vmatprep.subr.mxu0 0.0
  %779 = vmatpush2.msra.mxu0 0.0
  %780 = vmatprep.mubr.f32.mxu0 0.0
  %781 = vmatmul.mubr.f32.gmra.mxu0 %v714
  %v782 = vpop.f32.mrf.mxu0
  %v783 = vadd.f32 %v709, %v782
  %v784 = vpop.f32.mrf.mxu0
  %785 = vdwg.mxu0
  %v786 = vmax.f32 %v783, 0.0
  %v787 = vld [vmem:[%s5] sm:$0xff]
  %v788 = vld [vmem:[%s5 + $0x8] sm:$0xff]
  %v789 = vld [vmem:[%s5 + $0x10] sm:$0xff]
  %v790 = vld [vmem:[%s5 + $0x18] sm:$0xff]
  %v792 = vsel %vm41, %v786, 0
  %794 = vmatprep.subr.mxu0 0.0
  %795 = vmatpush1.msra.mxu0 0.0
  %796 = vmatprep.subr.mxu0 0.0
  %797 = vmatpush1.msra.mxu0 0.0
  %798 = vmatprep.subr.mxu0 0.0
  %799 = vmatpush1.msra.mxu0 0.0
  %800 = vmatprep.subr.mxu0 0.0
  %801 = vmatpush1.msra.mxu0 0.0
  %802 = vmatprep.subr.mxu0 0.0
  %803 = vmatpush1.msra.mxu0 0.0
  %804 = vmatprep.subr.mxu0 0.0
  %805 = vmatpush1.msra.mxu0 0.0
  %806 = vmatprep.subr.mxu0 0.0
  %807 = vmatpush1.msra.mxu0 0.0
  %808 = vmatprep.subr.mxu0 0.0
  %809 = vmatpush1.msra.mxu0 0.0
  %810 = vmatprep.subr.mxu0 0.0
  %811 = vmatpush1.msra.mxu0 0.0
  %812 = vmatprep.subr.mxu0 0.0
  %813 = vmatpush1.msra.mxu0 0.0
  %814 = vmatprep.subr.mxu0 0.0
  %815 = vmatpush1.msra.mxu0 0.0
  %816 = vmatprep.subr.mxu0 0.0
  %817 = vmatpush1.msra.mxu0 0.0
  %818 = vmatprep.subr.mxu0 0.0
  %819 = vmatpush1.msra.mxu0 %v790
  %820 = vmatprep.subr.mxu0 0.0
  %821 = vmatpush1.msra.mxu0 %v789
  %822 = vmatprep.subr.mxu0 0.0
  %823 = vmatpush1.msra.mxu0 %v788
  %824 = vmatprep.subr.mxu0 0.0
  %825 = vmatpush1.msra.mxu0 %v787
  %826 = vmatprep.subr.mxu0 0.0
  %827 = vmatpush2.msra.mxu0 0.0
  %828 = vmatprep.subr.mxu0 0.0
  %829 = vmatpush2.msra.mxu0 0.0
  %830 = vmatprep.subr.mxu0 0.0
  %831 = vmatpush2.msra.mxu0 0.0
  %832 = vmatprep.subr.mxu0 0.0
  %833 = vmatpush2.msra.mxu0 0.0
  %834 = vmatprep.subr.mxu0 0.0
  %835 = vmatpush2.msra.mxu0 0.0
  %836 = vmatprep.subr.mxu0 0.0
  %837 = vmatpush2.msra.mxu0 0.0
  %838 = vmatprep.subr.mxu0 0.0
  %839 = vmatpush2.msra.mxu0 0.0
  %840 = vmatprep.subr.mxu0 0.0
  %841 = vmatpush2.msra.mxu0 0.0
  %842 = vmatprep.subr.mxu0 0.0
  %843 = vmatpush2.msra.mxu0 0.0
  %844 = vmatprep.subr.mxu0 0.0
  %845 = vmatpush2.msra.mxu0 0.0
  %846 = vmatprep.subr.mxu0 0.0
  %847 = vmatpush2.msra.mxu0 0.0
  %848 = vmatprep.subr.mxu0 0.0
  %849 = vmatpush2.msra.mxu0 0.0
  %850 = vmatprep.subr.mxu0 0.0
  %851 = vmatpush2.msra.mxu0 0.0
  %852 = vmatprep.subr.mxu0 0.0
  %853 = vmatpush2.msra.mxu0 0.0
  %854 = vmatprep.subr.mxu0 0.0
  %855 = vmatpush2.msra.mxu0 0.0
  %856 = vmatprep.subr.mxu0 0.0
  %857 = vmatpush2.msra.mxu0 0.0
  %858 = vmatprep.mubr.f32.mxu0 0.0
  %859 = vmatmul.mubr.f32.gmra.mxu0 %v792
  %v860 = vpop.f32.mrf.mxu0
  %v861 = vadd.f32 0.0, %v860
  %v862 = vpop.f32.mrf.mxu0
  %863 = vdwg.mxu0
  %864 = vst [vmem:[%s6] sm:$0xff] %v861
  // Predicated region
  $region26: #{lstmdqn_forward.1} parent=0 // pred_check
    _
  $region27: #{lstmdqn_forward.1} parent=0 // pred_check_branch
    %866 = sbr.rel (0) target = $region29
  $region28: #{lstmdqn_forward.1} parent=0 // pred_region
    _
  $region29: #{lstmdqn_forward.1} parent=0 // pred_fallthru
    _
  // Predicated region
  $region30: #{lstmdqn_forward.1} parent=0 // pred_check
    _
  $region31: #{lstmdqn_forward.1} parent=0 // pred_check_branch
    %868 = sbr.rel (0) target = $region33
  $region32: #{lstmdqn_forward.1} parent=0 // pred_region
    _
  $region33: #{lstmdqn_forward.1} parent=0 // pred_fallthru
    _

</llo_original>
